<compile_context>
chip_gen: v6e
topology: v6e:2x2x1
jax: 0.10.0
libtpu: 0.0.40
codegen_flags: <defaults>
</compile_context>

<pallas_src>
import functools

import jax
import jax.numpy as jnp
from jax import lax
from jax.experimental import pallas as pl
from jax.experimental.pallas import tpu as pltpu


# Scoped-VMEM budget.  v7x has only 64 MiB of VMEM per TensorCore, so stay
# comfortably under it; v5e/v6e (128 MiB) have extra headroom regardless.
_VMEM_LIMIT_BYTES = 48 * 1024 * 1024


def _tile(dim, target, align):
    """Largest divisor of `dim` that is a multiple of `align` and <= `target`.

    Returns `dim` itself (a full-extent block, always legal) if `dim <= target`
    or no aligned divisor exists.
    """
    if dim <= target:
        return dim
    cand = (target // align) * align
    while cand >= align:
        if dim % cand == 0:
            return cand
        cand -= align
    # TODO(synk): a pl.cdiv grid with a pl.when-masked tail tile would avoid a
    # potentially large full-dim fallback for awkward (prime-ish) extents.
    return dim


def _head_group(heads):
    """Heads contracted per out-projection reduction step (g*d-deep MXU pass)."""
    for g in (4, 2, 1):
        if heads % g == 0:
            return g
    return 1


def _attn_exp_dtype():
    """bf16 exp on chips with a bf16 EUP/VPU (v6e/v7x); f32 on v5e and older."""
    try:
        kind = jax.devices()[0].device_kind.lower()
    except Exception:  # no device info -> be conservative
        return jnp.float32
    if any(tag in kind for tag in ("v2", "v3", "v4", "v5")):
        return jnp.float32
    return jnp.bfloat16


# ---------------------------------------------------------------------------
# Kernels
# ---------------------------------------------------------------------------

def _proj_heads_kernel(x_ref, w_ref, o_ref):
    """Per-head projection: o[h] = x @ w[h].

    x_ref: (tm, Cin) activation tile, resident across the inner head axis.
    w_ref: (1, Cin, d) one head's weight.  o_ref: (1, tm, d).
    """
    o_ref[0] = jnp.dot(x_ref[...], w_ref[0],
                       preferred_element_type=jnp.float32).astype(o_ref.dtype)


def _out_proj_kernel(a_ref, w_ref, b_ref, o_ref, acc_ref, *, g):
    """Output projection with the head merge as the reduction axis, `g` heads
    per grid step: y = sum_h attn[h] @ w_o[h] + b."""
    hh = pl.program_id(2)

    @pl.when(hh == 0)
    def _():
        acc_ref[...] = jnp.zeros_like(acc_ref)

    acc = acc_ref[...]
    for gg in range(g):                      # static unroll, g <= 4
        acc = acc + jnp.dot(a_ref[gg], w_ref[gg],
                            preferred_element_type=jnp.float32)
    acc_ref[...] = acc

    @pl.when(hh == pl.num_programs(2) - 1)
    def _():
        o_ref[...] = (acc_ref[...]
                      + b_ref[...].astype(jnp.float32)).astype(o_ref.dtype)


def _flash_attn_kernel(q_ref, k_ref, v_ref, o_ref, m_sc, l_sc, acc_sc, *,
                       exp_dtype):
    """Flash-style attention for one (batch, head, q-tile); grid axis 3 walks
    the context (reduction) in tiles with online softmax."""
    j = pl.program_id(3)

    @pl.when(j == 0)
    def _():
        m_sc[...] = jnp.full_like(m_sc, -jnp.inf)
        l_sc[...] = jnp.zeros_like(l_sc)
        acc_sc[...] = jnp.zeros_like(acc_sc)

    q = q_ref[0, 0]            # (tq, d), bf16
    k = k_ref[0, 0]            # (tk, d), bf16
    v = v_ref[0, 0]            # (tk, d), bf16

    # QK^T contracting on the last dims (no k.T relayout).  The softmax scale
    # is pre-folded into the Q weights; f32 accumulation preserves the
    # module's fp32-attention numerics with bf16 operands.
    s = lax.dot_general(q, k, (((1,), (1,)), ((), ())),
                        preferred_element_type=jnp.float32)       # (tq, tk)

    m_prev = m_sc[...]                                            # (tq, 1)
    m_new = jnp.maximum(m_prev, jnp.max(s, axis=-1, keepdims=True))
    alpha = jnp.exp(m_prev - m_new)                               # f32 (tq, 1)
    # Big exp in bf16 on v6e/v7x (bf16 EUP), f32 on v5e and older.
    p = jnp.exp((s - m_new).astype(exp_dtype))                    # (tq, tk)

    l_sc[...] = alpha * l_sc[...] + jnp.sum(p, axis=-1, keepdims=True,
                                            dtype=jnp.float32)
    acc_sc[...] = alpha * acc_sc[...] + jnp.dot(
        p.astype(v.dtype), v, preferred_element_type=jnp.float32)
    m_sc[...] = m_new

    @pl.when(j == pl.num_programs(3) - 1)
    def _():
        inv_l = pl.reciprocal(l_sc[...], approx=True)   # EUP slot, ~free
        o_ref[0, 0] = (acc_sc[...] * inv_l).astype(o_ref.dtype)


# ---------------------------------------------------------------------------
# Pallas wrappers
# ---------------------------------------------------------------------------

def project_heads(x2d, w_h, *, tm_target=512):
    """x2d: (T, Cin); w_h: (H, Cin, d) head-major weights -> (H, T, d).

    Grid is (row-tiles, heads) with the head axis innermost; the activation
    tile's index_map ignores the head axis, so it is DMA'd from HBM once per
    row-tile and stays VMEM-resident while the H (or 2H for fused K/V) head
    weights stream past it.
    """
    T, Cin = x2d.shape
    H, _, d = w_h.shape
    tm = _tile(T, tm_target, 8)
    itemsize = jnp.dtype(x2d.dtype).itemsize
    cost = pl.CostEstimate(
        flops=2 * T * Cin * H * d,
        transcendentals=0,
        bytes_accessed=(T * Cin + H * Cin * d + H * T * d) * itemsize)
    return pl.pallas_call(
        _proj_heads_kernel,
        out_shape=jax.ShapeDtypeStruct((H, T, d), x2d.dtype),
        grid=(T // tm, H),
        in_specs=[
            pl.BlockSpec((tm, Cin), lambda i, hh: (i, 0)),      # resident over hh
            pl.BlockSpec((1, Cin, d), lambda i, hh: (hh, 0, 0)),
        ],
        out_specs=pl.BlockSpec((1, tm, d), lambda i, hh: (hh, i, 0)),
        compiler_params=pltpu.CompilerParams(
            dimension_semantics=("parallel", "arbitrary"),
            vmem_limit_bytes=_VMEM_LIMIT_BYTES),
        cost_estimate=cost,
    )(x2d, w_h)


def out_projection(a_h, w_o_h, b_o, *, out_dtype=None, tm_target=512,
                   tn_target=512, group=None):
    """a_h: (H, T, d) per-head attention out; w_o_h: (H, d, Cout); b_o: (1, Cout)
    -> (T, Cout).  The head axis is the reduction (merge) axis, walked `group`
    heads per grid step (g*d-deep MXU contraction per step)."""
    H, T, d = a_h.shape
    Cout = w_o_h.shape[2]
    out_dtype = out_dtype or a_h.dtype
    g = group or _head_group(H)
    assert H % g == 0
    tm = _tile(T, tm_target, 8)
    tn = _tile(Cout, tn_target, 128)
    itemsize = jnp.dtype(a_h.dtype).itemsize
    cost = pl.CostEstimate(
        flops=2 * H * T * d * Cout,
        transcendentals=0,
        bytes_accessed=(H * T * d + H * d * Cout + Cout + T * Cout) * itemsize)
    kern = functools.partial(_out_proj_kernel, g=g)
    return pl.pallas_call(
        kern,
        out_shape=jax.ShapeDtypeStruct((T, Cout), out_dtype),
        grid=(T // tm, Cout // tn, H // g),
        in_specs=[
            pl.BlockSpec((g, tm, d), lambda i, j, hh: (hh, i, 0)),
            pl.BlockSpec((g, d, tn), lambda i, j, hh: (hh, 0, j)),
            pl.BlockSpec((1, tn), lambda i, j, hh: (0, j)),
        ],
        out_specs=pl.BlockSpec((tm, tn), lambda i, j, hh: (i, j)),
        scratch_shapes=[pltpu.VMEM((tm, tn), jnp.float32)],
        compiler_params=pltpu.CompilerParams(
            dimension_semantics=("parallel", "parallel", "arbitrary"),
            vmem_limit_bytes=_VMEM_LIMIT_BYTES),
        cost_estimate=cost,
    )(a_h, w_o_h, b_o)


def flash_attention(q, kv, num_heads, *, exp_dtype=jnp.float32,
                    tq_target=512, tk_target=512):
    """q: (h, B, N, d); kv: (2h, B, M, d) (K heads then V heads) -> (h, B, N, d)."""
    h, B, N, d = q.shape
    M = kv.shape[2]
    tq = _tile(N, tq_target, 8)
    tk = _tile(M, tk_target, 128 if tk_target >= 128 else 8)
    itemsize = jnp.dtype(q.dtype).itemsize
    cost = pl.CostEstimate(
        flops=4 * h * B * N * M * d,                 # QK^T + PV
        transcendentals=h * B * N * M,               # exp
        bytes_accessed=(q.size + kv.size + h * B * N * d) * itemsize)
    kern = functools.partial(_flash_attn_kernel, exp_dtype=exp_dtype)
    return pl.pallas_call(
        kern,
        out_shape=jax.ShapeDtypeStruct((h, B, N, d), q.dtype),
        grid=(B, h, N // tq, M // tk),
        in_specs=[
            pl.BlockSpec((1, 1, tq, d), lambda b, hh, i, j: (hh, b, i, 0)),
            pl.BlockSpec((1, 1, tk, d), lambda b, hh, i, j: (hh, b, j, 0)),
            pl.BlockSpec((1, 1, tk, d),
                         lambda b, hh, i, j: (num_heads + hh, b, j, 0)),
        ],
        out_specs=pl.BlockSpec((1, 1, tq, d), lambda b, hh, i, j: (hh, b, i, 0)),
        scratch_shapes=[
            pltpu.VMEM((tq, 1), jnp.float32),   # m (running max)
            pltpu.VMEM((tq, 1), jnp.float32),   # l (running sum)
            pltpu.VMEM((tq, d), jnp.float32),   # acc
        ],
        compiler_params=pltpu.CompilerParams(
            dimension_semantics=("parallel", "parallel", "parallel", "arbitrary"),
            vmem_limit_bytes=_VMEM_LIMIT_BYTES),
        cost_estimate=cost,
    )(q, kv, kv)   # same array bound twice: K heads and V heads via index maps


# ---------------------------------------------------------------------------
# CrossAttention module (parameter setup in plain JAX, hot path in Pallas)
# ---------------------------------------------------------------------------

class CrossAttentionPallas:
    def __init__(self, query_dim, context_dim=None, heads=8, dim_head=64,
                 dropout=0.0, compute_dtype=jnp.bfloat16, exp_dtype=None,
                 tile_cfg=None, key=jax.random.PRNGKey(0)):
        inner_dim = dim_head * heads
        context_dim = context_dim or query_dim
        self.scale = dim_head ** (-0.5)
        self.heads = heads
        self.dim_head = dim_head
        self.compute_dtype = compute_dtype
        self.exp_dtype = exp_dtype or _attn_exp_dtype()
        self.tile_cfg = dict(proj_tm=512, out_tm=512, out_tn=512,
                             attn_tq=512, attn_tk=512, out_group=None)
        if tile_cfg:
            self.tile_cfg.update(tile_cfg)

        kq, kk, kv, ko, kb = jax.random.split(key, 5)

        def _init(k, fan_in, fan_out):
            bound = 1.0 / (fan_in ** 0.5)
            # stored as (in, out): equivalent to PyTorch's x @ W.T
            return jax.random.uniform(
                k, (fan_in, fan_out), jnp.float32, -bound, bound)

        # Flat f32 master weights (kept for the pure-JAX reference).
        self.w_q = _init(kq, query_dim, inner_dim)
        self.w_k = _init(kk, context_dim, inner_dim)
        self.w_v = _init(kv, context_dim, inner_dim)
        self.w_o = _init(ko, inner_dim, query_dim)
        bound_o = 1.0 / (inner_dim ** 0.5)
        self.b_o = jax.random.uniform(
            kb, (1, query_dim), jnp.float32, -bound_o, bound_o)

        # Head-major bf16 copies for the kernels (one-time reorg at init).
        # The softmax scale is folded into the Q weights so the attention
        # kernel has no per-tile VPU multiply.
        h, d = heads, dim_head
        cd = compute_dtype
        self.w_q_h = (self.w_q.reshape(query_dim, h, d).transpose(1, 0, 2)
                      * self.scale).astype(cd)                       # (h, Cq, d)
        w_k_h = self.w_k.reshape(context_dim, h, d).transpose(1, 0, 2)
        w_v_h = self.w_v.reshape(context_dim, h, d).transpose(1, 0, 2)
        self.w_kv_h = jnp.concatenate([w_k_h, w_v_h], 0).astype(cd)  # (2h, Cc, d)
        self.w_o_h = self.w_o.reshape(h, d, query_dim).astype(cd)    # (h, d, Cq)
        # dropout=0.0 (eval semantics) -> identity; nothing to do.

    def __call__(self, x, context=None, mask=None):
        # TODO(synk): attention-mask path (masked_fill with -max) not wired in;
        # only mask=None is supported here.
        assert mask is None
        B, N, Cq = x.shape
        context = x if context is None else context
        M = context.shape[1]
        h, d = self.heads, self.dim_head
        cfg = self.tile_cfg

        x2d = x.reshape(B * N, Cq).astype(self.compute_dtype)
        c2d = context.reshape(B * M, context.shape[-1]).astype(self.compute_dtype)

        # --- projections (resident-activation Pallas matmuls; K/V fused) ---
        q_h = project_heads(x2d, self.w_q_h, tm_target=cfg["proj_tm"])    # (h, B*N, d)
        kv_h = project_heads(c2d, self.w_kv_h, tm_target=cfg["proj_tm"])  # (2h, B*M, d)

        # 'b n (h d) -> (b h) n d' is realized by the head-major layout plus
        # the attention BlockSpec index maps: free reshapes only.
        q4 = q_h.reshape(h, B, N, d)
        kv4 = kv_h.reshape(2 * h, B, M, d)

        # --- flash-style scaled dot-product attention ---
        attn = flash_attention(q4, kv4, h, exp_dtype=self.exp_dtype,
                               tq_target=cfg["attn_tq"],
                               tk_target=cfg["attn_tk"])              # (h, B, N, d)

        # --- output projection; head merge folded in as the reduction axis ---
        y2d = out_projection(attn.reshape(h, B * N, d), self.w_o_h, self.b_o,
                             out_dtype=x.dtype, tm_target=cfg["out_tm"],
                             tn_target=cfg["out_tn"], group=cfg["out_group"])
        return y2d.reshape(B, N, Cq)


# ---------------------------------------------------------------------------
# Pure-JAX reference for validation
# ---------------------------------------------------------------------------

def reference_forward(mod, x, context=None):
    """f32 reference consuming the same (bf16-rounded, scale-folded) parameters
    the kernels use, so the comparison isolates kernel numerics (online
    softmax, bf16 intermediates, approx reciprocal) from parameter rounding."""
    context = x if context is None else context
    h = mod.heads
    f32 = jnp.float32
    xf = x.astype(mod.compute_dtype).astype(f32)
    cf = context.astype(mod.compute_dtype).astype(f32)
    w_q = mod.w_q_h.astype(f32)          # (h, Cq, d), scale already folded
    w_k = mod.w_kv_h[:h].astype(f32)     # (h, Cc, d)
    w_v = mod.w_kv_h[h:].astype(f32)     # (h, Cc, d)
    w_o = mod.w_o_h.astype(f32)          # (h, d, Cq)
    q = jnp.einsum("bnc,hcd->bhnd", xf, w_q)
    k = jnp.einsum("bmc,hcd->bhmd", cf, w_k)
    v = jnp.einsum("bmc,hcd->bhmd", cf, w_v)
    sim = jnp.einsum("bhnd,bhmd->bhnm", q, k)
    p = jax.nn.softmax(sim, axis=-1)
    o = jnp.einsum("bhnm,bhmd->bhnd", p, v)
    return jnp.einsum("bhnd,hdc->bnc", o, w_o) + mod.b_o[0]


# ---------------------------------------------------------------------------
# Demo
# ---------------------------------------------------------------------------

if __name__ == "__main__":
    B = 2            # batch
    N = 16           # query tokens
    M = 16           # context tokens
    query_dim = 32
    context_dim = 16
    heads = 4
    dim_head = 8

    root = jax.random.PRNGKey(0)
    k_params, k_x, k_ctx = jax.random.split(root, 3)

    mod = CrossAttentionPallas(query_dim, context_dim=context_dim,
                               heads=heads, dim_head=dim_head,
                               dropout=0.0, key=k_params)

    x = jax.random.normal(k_x, (B, N, query_dim), jnp.float32)
    context = jax.random.normal(k_ctx, (B, M, context_dim), jnp.float32)

    y_ref = reference_forward(mod, x, context)

    # 1) default (large) tiles: every tensor fits in a single block here.
    y = jax.block_until_ready(mod(x, context))
    assert y.shape == (B, N, query_dim)
    assert jnp.allclose(y, y_ref, atol=2e-2, rtol=2e-2), "mismatch (default tiles)"

    # 2) small tiles to exercise the multi-tile paths: online-softmax reduction
    #    across context tiles, grouped-head reduction in the output projection,
    #    and the resident-activation projection over several row tiles.
    mod.tile_cfg.update(proj_tm=8, out_tm=8, attn_tq=8, attn_tk=8, out_group=2)
    y2 = jax.block_until_ready(mod(x, context))
    assert jnp.allclose(y2, y_ref, atol=2e-2, rtol=2e-2), "mismatch (small tiles)"

    print("KERNEL_OK")
</pallas_src>

<mosaic_0001>
module attributes {stable_mosaic.version = 11 : i64} {
  func.func @_proj_heads_kernel(%arg0: i32, %arg1: i32, %arg2: memref<32x32xbf16, #tpu.memory_space<vmem>>, %arg3: memref<1x32x8xbf16, #tpu.memory_space<vmem>>, %arg4: memref<1x32x8xbf16, #tpu.memory_space<vmem>>) attributes {dimension_semantics = [#tpu.dimension_semantics<parallel>, #tpu.dimension_semantics<arbitrary>], iteration_bounds = array<i64: 1, 4>, scalar_prefetch = 0 : i64, scratch_operands = 0 : i64, tpu.core_type = #tpu.core_type<tc>, window_params = [{transform_indices = @transform_0, window_bounds = array<i64: 32, 32>}, {transform_indices = @transform_1, window_bounds = array<i64: 1, 32, 8>}, {transform_indices = @transform_2, window_bounds = array<i64: 1, 32, 8>}]} {
    %c0 = arith.constant 0 : index
    %c0_0 = arith.constant 0 : index
    %0 = vector.load %arg2[%c0, %c0_0] : memref<32x32xbf16, #tpu.memory_space<vmem>>, vector<32x32xbf16>
    %c0_1 = arith.constant 0 : index
    %c0_2 = arith.constant 0 : index
    %c0_3 = arith.constant 0 : index
    %1 = vector.load %arg3[%c0_1, %c0_2, %c0_3] : memref<1x32x8xbf16, #tpu.memory_space<vmem>>, vector<1x32x8xbf16>
    %2 = vector.shape_cast %1 : vector<1x32x8xbf16> to vector<32x8xbf16>
    %cst = arith.constant dense<0.000000e+00> : vector<32x8xf32>
    %3 = tpu.matmul %0, %2, %cst {dimension_numbers = #tpu.dot_dimension_numbers<[1], [0], [0], [1], [0, 0, 1, 1], [], []>} : vector<32x32xbf16>, vector<32x8xbf16>, vector<32x8xf32> -> vector<32x8xf32>
    %4 = arith.truncf %3 : vector<32x8xf32> to vector<32x8xbf16>
    %c0_4 = arith.constant 0 : index
    %c0_5 = arith.constant 0 : index
    %c0_6 = arith.constant 0 : index
    %5 = vector.load %arg4[%c0_4, %c0_5, %c0_6] : memref<1x32x8xbf16, #tpu.memory_space<vmem>>, vector<1x32x8xbf16>
    %6 = vector.shape_cast %5 : vector<1x32x8xbf16> to vector<32x8xbf16>
    %7 = vector.shape_cast %4 : vector<32x8xbf16> to vector<1x32x8xbf16>
    tpu.vector_store %arg4[%c0_4, %c0_5, %c0_6], %7 {strides = array<i32>} : memref<1x32x8xbf16, #tpu.memory_space<vmem>>, vector<1x32x8xbf16>,
    return
  }
  func.func @transform_0(%arg0: i32, %arg1: i32) -> (i32, i32) {
    %c0_i32 = arith.constant 0 : i32
    %c0_i32_0 = arith.constant 0 : i32
    return %arg0, %c0_i32 : i32, i32
  }
  func.func @transform_1(%arg0: i32, %arg1: i32) -> (i32, i32, i32) {
    %c0_i32 = arith.constant 0 : i32
    %c0_i32_0 = arith.constant 0 : i32
    %c0_i32_1 = arith.constant 0 : i32
    return %arg1, %c0_i32, %c0_i32_0 : i32, i32, i32
  }
  func.func @transform_2(%arg0: i32, %arg1: i32) -> (i32, i32, i32) {
    %c0_i32 = arith.constant 0 : i32
    %c0_i32_0 = arith.constant 0 : i32
    return %arg1, %arg0, %c0_i32 : i32, i32, i32
  }
}

</mosaic_0001>

<llo_original>
// kernel: tpu_custom_call.1
$region0: #{tpu_custom_call.1}
  #allocation0 [shape = 'u32[]', space=smem, size = 0x4, offset = 0x4, fixed_abs, tag = 'smem constant byte address 0x4 - core index']
  #allocation1 [shape = 'u32[144,128]{1,0:T(1,128)}', space=vmem, size = 0x12000, scoped, tag = 'internal scratch']
  %s0 = inlined_call_operand.vmem [shape: bf16[32,32], index: 0, kind: input, shape index: {}]
  %s1 = inlined_call_operand.vmem [shape: bf16[4,32,8], index: 1, kind: input, shape index: {}]
  %s2 = inlined_call_operand.vmem [shape: bf16[4,32,8], index: 2, kind: output, shape index: {}]
  %s3 = sld [smem:[#allocation0]]
  $region41: #{tpu_custom_call.1} parent=0
    _
  %s5 = ssub.s32 1, %s3
  %s6 = scalar_select 0, %s5, %s3
  loop: start=0, step=1, limit=6
  $region2: #{tpu_custom_call.1} parent=0 // loop_pre_header
    _
  $region3: #{tpu_custom_call.1} parent=0 // loop_header
    %s8 = sphi 0, %s12
    %p9 = scmp.ge.s32.totalorder %s8, 6
    %s15 = sphi 0, %s27
    %s16 = sphi 0, %s23
    %s17 = sphi 0, %s15
    %s18 = sphi 0, %s16
    %s19 = sphi 0, %s17
    %s20 = sphi 0, %s18
    %s30 = sphi 0, %s32
    %s33 = sphi 0, %s30
    %s34 = sphi 0, %s33
    %s50 = sphi 0, %s34
    %s56 = sphi 0, %s58
    %s59 = sphi 0, %s56
    %s60 = sphi 0, %s59
    %s76 = sphi 0, %s60
    %s84 = sphi 0, %s86
    %s87 = sphi 0, %s84
    %s88 = sphi 0, %s87
    %s104 = sphi 0, %s88
  $region4: #{tpu_custom_call.1} parent=0 // loop_header_branch
    %11 = sbr.rel (%p9) target = $region8
  $region5: #{tpu_custom_call.1} parent=0 // loop_body
    %s13 = ssub.s32 %s8, 1
    %s14 = ssub.s32 %s8, 2
    %s21 = sadd.s32 1, %s16
    %p22 = scmp.ge.s32.totalorder %s21, 4
    %s23 = scalar_select %p22, 0, %s21
    %s24 = sadd.s32 1, %s15
    %s25 = scalar_select %p22, %s24, %s15
    %p26 = scmp.ge.s32.totalorder %s25, 1
    %s27 = scalar_select %p26, 0, %s25
    %s28 = ssub.s32 %s15, %s27
    %p29 = scmp.eq.s32.totalorder %s28, 0
    %s31 = sadd.s32 %s30, 1
    %s32 = scalar_select %p29, %s30, %s31
    %p35 = pneg %p29
    %p36 = scmp.eq.s32.totalorder %s8, 3
    %p37 = por %p35, %p36
    %p38 = scmp.ne.s32.totalorder %s30, %s33
    %p39 = scmp.eq.s32.totalorder %s8, 0
    %p40 = por %p38, %p39
    %p41 = scmp.ne.s32.totalorder %s30, %s33
    %p42 = scmp.eq.s32.totalorder %s13, 3
    %p43 = por %p41, %p42
    %p44 = scmp.ne.s32.totalorder %s33, %s34
    %p45 = scmp.eq.s32.totalorder %s13, 0
    %p46 = por %p44, %p45
    %p47 = scmp.ne.s32.totalorder %s33, %s34
    %p48 = scmp.eq.s32.totalorder %s14, 3
    %p49 = por %p47, %p48
    %p51 = scmp.ne.s32.totalorder %s34, %s50
    %p52 = scmp.eq.s32.totalorder %s14, 0
    %p53 = por %p51, %p52
    %s54 = ssub.s32 %s16, %s23
    %p55 = scmp.eq.s32.totalorder %s54, 0
    %s57 = sadd.s32 %s56, 1
    %s58 = scalar_select %p55, %s56, %s57
    %p61 = pneg %p55
    %p62 = scmp.eq.s32.totalorder %s8, 3
    %p63 = por %p61, %p62
    %p64 = scmp.ne.s32.totalorder %s56, %s59
    %p65 = scmp.eq.s32.totalorder %s8, 0
    %p66 = por %p64, %p65
    %p67 = scmp.ne.s32.totalorder %s56, %s59
    %p68 = scmp.eq.s32.totalorder %s13, 3
    %p69 = por %p67, %p68
    %p70 = scmp.ne.s32.totalorder %s59, %s60
    %p71 = scmp.eq.s32.totalorder %s13, 0
    %p72 = por %p70, %p71
    %p73 = scmp.ne.s32.totalorder %s59, %s60
    %p74 = scmp.eq.s32.totalorder %s14, 3
    %p75 = por %p73, %p74
    %p77 = scmp.ne.s32.totalorder %s60, %s76
    %p78 = scmp.eq.s32.totalorder %s14, 0
    %p79 = por %p77, %p78
    %s80 = ssub.s32 %s16, %s23
    %s81 = ssub.s32 %s15, %s27
    %s82 = sor.u32 %s80, %s81
    %p83 = scmp.eq.s32.totalorder %s82, 0
    %s85 = sadd.s32 %s84, 1
    %s86 = scalar_select %p83, %s84, %s85
    %p89 = pneg %p83
    %p90 = scmp.eq.s32.totalorder %s8, 3
    %p91 = por %p89, %p90
    %p92 = scmp.ne.s32.totalorder %s84, %s87
    %p93 = scmp.eq.s32.totalorder %s8, 0
    %p94 = por %p92, %p93
    %p95 = scmp.ne.s32.totalorder %s84, %s87
    %p96 = scmp.eq.s32.totalorder %s13, 3
    %p97 = por %p95, %p96
    %p98 = scmp.ne.s32.totalorder %s87, %s88
    %p99 = scmp.eq.s32.totalorder %s13, 0
    %p100 = por %p98, %p99
    %p101 = scmp.ne.s32.totalorder %s87, %s88
    %p102 = scmp.eq.s32.totalorder %s14, 3
    %p103 = por %p101, %p102
    %p105 = scmp.ne.s32.totalorder %s88, %s104
    %p106 = scmp.eq.s32.totalorder %s14, 0
    %p107 = por %p105, %p106
    %p108 = scmp.le.s32.totalorder 1, %s8
    %p109 = scmp.lt.s32.totalorder %s8, 5
    %p110 = pnand %p108, %p109
    %p111 = pneg %p110
    // Predicated region
    $region9: #{tpu_custom_call.1} parent=5 // pred_check
      _
    $region10: #{tpu_custom_call.1} parent=5 // pred_check_branch
      %113 = sbr.rel (%p110) target = $region12
    $region11: #{tpu_custom_call.1} parent=5 // pred_region
      %s114 = ssub.s32 %s8, 1
      // Predicated region
      $region13: #{tpu_custom_call.1} parent=11 // pred_check
        %p115 = pneg %p46
      $region14: #{tpu_custom_call.1} parent=11 // pred_check_branch
        %117 = sbr.rel (%p115) target = $region16
      $region15: #{tpu_custom_call.1} parent=11 // pred_region
        %s118 = smul.u32 4, %s17
        %p119 = scmp.lt.s32.totalorder %s118, 3
        %s120 = scalar_select %p119, %s118, 3
        %s121 = smul.addr %s120, 4
        %s122 = scalar_lea.vmem %s0, %s121
        %s123 = smul.u32 4, %s17
      $region16: #{tpu_custom_call.1} parent=11 // pred_fallthru
        _
    $region12: #{tpu_custom_call.1} parent=5 // pred_fallthru
      _
    %p124 = scmp.lt.s32.totalorder %s8, 4
    // Predicated region
    $region17: #{tpu_custom_call.1} parent=5 // pred_check
      %p125 = pneg %p124
    $region18: #{tpu_custom_call.1} parent=5 // pred_check_branch
      %127 = sbr.rel (%p125) target = $region20
    $region19: #{tpu_custom_call.1} parent=5 // pred_region
      // Predicated region
      $region21: #{tpu_custom_call.1} parent=19 // pred_check
        %p128 = pneg %p66
      $region22: #{tpu_custom_call.1} parent=19 // pred_check_branch
        %130 = sbr.rel (%p128) target = $region24
      $region23: #{tpu_custom_call.1} parent=19 // pred_region
        %p131 = scmp.lt.s32.totalorder %s16, 3
        %s132 = scalar_select %p131, %s16, 3
        %s133 = smul.addr %s132, 4
        %s134 = smul.addr %s133, 4
        %s135 = scalar_lea.vmem %s1, %s134
      $region24: #{tpu_custom_call.1} parent=19 // pred_fallthru
        _
    $region20: #{tpu_custom_call.1} parent=5 // pred_fallthru
      _
    %p136 = scmp.le.s32.totalorder 1, %s8
    %p137 = scmp.lt.s32.totalorder %s8, 5
    %p138 = pnand %p136, %p137
    %p139 = pneg %p138
    // Predicated region
    $region25: #{tpu_custom_call.1} parent=5 // pred_check
      _
    $region26: #{tpu_custom_call.1} parent=5 // pred_check_branch
      %141 = sbr.rel (%p138) target = $region28
    $region27: #{tpu_custom_call.1} parent=5 // pred_region
      %s142 = ssub.s32 %s8, 1
      %s143 = smul.u32 4, %s17
      %p144 = scmp.lt.s32.totalorder %s143, 3
      %s145 = scalar_select %p144, %s143, 3
      %s146 = smul.addr %s145, 4
      %s147 = scalar_lea.vmem %s0, %s146
      %p148 = pneg %p46
      %p149 = pneg %p43
      %p150 = scmp.lt.s32.totalorder %s18, 3
      %s151 = scalar_select %p150, %s18, 3
      %s152 = smul.addr %s151, 4
      %s153 = smul.addr %s152, 4
      %s154 = scalar_lea.vmem %s1, %s153
      %p155 = pneg %p72
      %p156 = pneg %p69
      %p157 = pneg %p100
      %p158 = pneg %p97
      %s159 = smul.u32 4, %s17
      %p160 = scmp.lt.s32.totalorder %s18, 3
      %s161 = scalar_select %p160, %s18, 3
      %p162 = scmp.lt.s32.totalorder %s159, 3
      %s163 = scalar_select %p162, %s159, 3
      %s164 = smul.addr %s161, 4
      %s165 = sadd.s32 %s163, %s164
      %s166 = smul.addr %s165, 4
      %s167 = scalar_lea.vmem %s2, %s166
      %s168 = smul.u32 4, %s17
      %p169 = scmp.lt.s32.totalorder %s168, 3
      %s170 = scalar_select %p169, %s168, 3
      %s171 = smul.addr %s170, 4
      %s172 = scalar_lea.vmem %s0, %s171
      %s173 = smul.u32 4, %s17
      %p174 = scmp.lt.s32.totalorder %s18, 3
      %s175 = scalar_select %p174, %s18, 3
      %s176 = smul.addr %s175, 4
      %s177 = smul.addr %s176, 4
      %s178 = scalar_lea.vmem %s1, %s177
      %s179 = smul.u32 4, %s17
      %p180 = scmp.lt.s32.totalorder %s18, 3
      %s181 = scalar_select %p180, %s18, 3
      %p182 = scmp.lt.s32.totalorder %s179, 3
      %s183 = scalar_select %p182, %s179, 3
      %s184 = smul.addr %s181, 4
      %s185 = sadd.s32 %s183, %s184
      %s186 = smul.addr %s185, 4
      %s187 = scalar_lea.vmem %s2, %s186
      %s188 = smul.u32 4, %s17
      %v190 = vld [vmem:[%s172] sm:$0xf]
      %v191 = vld [vmem:[%s172 + $0x4] sm:$0xf]
      %v192 = vld [vmem:[%s172 + $0x8] sm:$0xf]
      %v193 = vld [vmem:[%s172 + $0xc] sm:$0xf]
      %v194 = vld [vmem:[%s178] sm:$0xf]
      %v195 = vld [vmem:[%s178 + $0x4] sm:$0xf]
      %v196 = vld [vmem:[%s178 + $0x8] sm:$0xf]
      %v197 = vld [vmem:[%s178 + $0xc] sm:$0xf]
      %v202 = vunpack.c.l.b16 %v190
      %v203 = vunpack.c.l.b16 %v191
      %v204 = vunpack.c.l.b16 %v192
      %v205 = vunpack.c.l.b16 %v193
      %v206 = vpack.c.b16 %v203, %v202
      %v207 = vpack.c.b16 %v205, %v204
      %v212 = vunpack.c.l.b16 %v194
      %v213 = vunpack.c.l.b16 %v195
      %v214 = vunpack.c.l.b16 %v196
      %v215 = vunpack.c.l.b16 %v197
      %v216 = vpack.c.b16 %v213, %v212
      %v217 = vpack.c.b16 %v215, %v214
      %vm220 = vcmask 261120
      %v222 = vsel %vm220, %v206, 0
      %v225 = vsel %vm220, %v207, 0
      %227 = vmatprep.subr.bf16.mxu0 0
      %228 = vmatpush1.bf16.msra.mxu0 0
      %229 = vmatprep.subr.bf16.mxu0 0
      %230 = vmatpush1.bf16.msra.mxu0 0
      %231 = vmatprep.subr.bf16.mxu0 0
      %232 = vmatpush1.bf16.msra.mxu0 0
      %233 = vmatprep.subr.bf16.mxu0 0
      %234 = vmatpush1.bf16.msra.mxu0 0
      %235 = vmatprep.subr.bf16.mxu0 0
      %236 = vmatpush1.bf16.msra.mxu0 0
      %237 = vmatprep.subr.bf16.mxu0 0
      %238 = vmatpush1.bf16.msra.mxu0 0
      %239 = vmatprep.subr.bf16.mxu0 0
      %240 = vmatpush1.bf16.msra.mxu0 %v217
      %241 = vmatprep.subr.bf16.mxu0 0
      %242 = vmatpush1.bf16.msra.mxu0 %v216
      %243 = vmatprep.subr.bf16.mxu0 0
      %244 = vmatpush2.bf16.msra.mxu0 0
      %245 = vmatprep.subr.bf16.mxu0 0
      %246 = vmatpush2.bf16.msra.mxu0 0
      %247 = vmatprep.subr.bf16.mxu0 0
      %248 = vmatpush2.bf16.msra.mxu0 0
      %249 = vmatprep.subr.bf16.mxu0 0
      %250 = vmatpush2.bf16.msra.mxu0 0
      %251 = vmatprep.subr.bf16.mxu0 0
      %252 = vmatpush2.bf16.msra.mxu0 0
      %253 = vmatprep.subr.bf16.mxu0 0
      %254 = vmatpush2.bf16.msra.mxu0 0
      %255 = vmatprep.subr.bf16.mxu0 0
      %256 = vmatpush2.bf16.msra.mxu0 0
      %257 = vmatprep.subr.bf16.mxu0 0
      %258 = vmatpush2.bf16.msra.mxu0 0
      %259 = vmatprep.mubr.bf16.mxu0 0
      %260 = vmatmul.mubr.bf16.gmra.mxu0 %v222
      %v261 = vpop.f32.mrf.mxu0
      %v262 = vadd.f32 0.0, %v261
      %v263 = vpop.f32.mrf.mxu0
      %v264 = vpop.f32.mrf.mxu0
      %v265 = vadd.f32 0.0, %v264
      %v266 = vpop.f32.mrf.mxu0
      %267 = vmatprep.mubr.bf16.mxu0 0
      %268 = vmatmul.mubr.bf16.gmra.mxu0 %v225
      %v269 = vpop.f32.mrf.mxu0
      %v270 = vadd.f32 0.0, %v269
      %v271 = vpop.f32.mrf.mxu0
      %v272 = vpop.f32.mrf.mxu0
      %v273 = vadd.f32 0.0, %v272
      %v274 = vpop.f32.mrf.mxu0
      %275 = vdwg.mxu0
      %v276 = vpack.c.bf16 %v265, %v262
      %v277 = vpack.c.bf16 %v273, %v270
      %v280 = vunpack.c.l.b16 %v276
      %v281 = vunpack.c.h.b16 %v276
      %v282 = vunpack.c.l.b16 %v277
      %v283 = vunpack.c.h.b16 %v277
      %v284 = vpack.c.b16 %v280, %v280
      %v285 = vpack.c.b16 %v281, %v281
      %v286 = vpack.c.b16 %v282, %v282
      %v287 = vpack.c.b16 %v283, %v283
      %vm292 = vcmask 60416
      %293 = vst.msk [vmem:[%s187] sm:$0xf] %vm292, %v284
      %294 = vst.msk [vmem:[%s187 + $0x4] sm:$0xf] %vm292, %v285
      %295 = vst.msk [vmem:[%s187 + $0x8] sm:$0xf] %vm292, %v286
      %296 = vst.msk [vmem:[%s187 + $0xc] sm:$0xf] %vm292, %v287
      %s297 = smul.u32 4, %s17
      %p298 = scmp.lt.s32.totalorder %s18, 3
      %s299 = scalar_select %p298, %s18, 3
      %p300 = scmp.lt.s32.totalorder %s297, 3
      %s301 = scalar_select %p300, %s297, 3
      %s302 = smul.addr %s299, 4
      %s303 = sadd.s32 %s301, %s302
      %s304 = smul.addr %s303, 4
      %s305 = scalar_lea.vmem %s2, %s304
      // Predicated region
      $region29: #{tpu_custom_call.1} parent=27 // pred_check
        %p306 = pneg %p97
      $region30: #{tpu_custom_call.1} parent=27 // pred_check_branch
        %308 = sbr.rel (%p306) target = $region32
      $region31: #{tpu_custom_call.1} parent=27 // pred_region
        %s309 = smul.u32 4, %s17
      $region32: #{tpu_custom_call.1} parent=27 // pred_fallthru
        _
    $region28: #{tpu_custom_call.1} parent=5 // pred_fallthru
      _
    %p310 = scmp.le.s32.totalorder 2, %s8
    // Predicated region
    $region33: #{tpu_custom_call.1} parent=5 // pred_check
      %p311 = pneg %p310
    $region34: #{tpu_custom_call.1} parent=5 // pred_check_branch
      %313 = sbr.rel (%p311) target = $region36
    $region35: #{tpu_custom_call.1} parent=5 // pred_region
      %s314 = ssub.s32 %s8, 2
      // Predicated region
      $region37: #{tpu_custom_call.1} parent=35 // pred_check
        %p315 = pneg %p103
      $region38: #{tpu_custom_call.1} parent=35 // pred_check_branch
        %317 = sbr.rel (%p315) target = $region40
      $region39: #{tpu_custom_call.1} parent=35 // pred_region
        %s318 = smul.u32 4, %s19
        %p319 = scmp.lt.s32.totalorder %s20, 3
        %s320 = scalar_select %p319, %s20, 3
        %p321 = scmp.lt.s32.totalorder %s318, 3
        %s322 = scalar_select %p321, %s318, 3
        %s323 = smul.addr %s320, 4
        %s324 = sadd.s32 %s322, %s323
        %s325 = smul.addr %s324, 4
        %s326 = scalar_lea.vmem %s2, %s325
      $region40: #{tpu_custom_call.1} parent=35 // pred_fallthru
        _
    $region36: #{tpu_custom_call.1} parent=5 // pred_fallthru
      _
  $region6: #{tpu_custom_call.1} parent=0 // loop_footer
    %s12 = sadd.s32 1, %s8
  $region7: #{tpu_custom_call.1} parent=0 // loop_footer_branch
    %7 = sbr.rel target = $region3
  $region8: #{tpu_custom_call.1} parent=0 // loop_exit
    _

</llo_original>
